<compile_context>
chip_gen: v7x
topology: tpu7x:2x2x1
jax: 0.10.0
libtpu: 0.0.40
codegen_flags: <defaults>
</compile_context>

<pallas_src>
import jax
import jax.numpy as jnp
from jax.experimental import pallas as pl
from jax.experimental.pallas import tpu as pltpu

_LANE = 128
_SUBLANE = 8


def _make_isru_kernel(num_tensors, c):
    c_val = float(c)  # constructor constant -> close over it at trace time
    reuse_upcasts = num_tensors <= 4  # cap vreg live range for large L

    def kernel(*refs):
        x_refs = refs[:num_tensors]
        o_refs = refs[num_tensors:]

        xfs = []
        sumsq = None
        for x_ref in x_refs:
            xf = x_ref[...].astype(jnp.float32)
            if reuse_upcasts:
                xfs.append(xf)
            sq = xf * xf
            sumsq = sq if sumsq is None else sumsq + sq

        inv = jax.lax.rsqrt(sumsq + c_val)  # single EUP rsqrt, no divide

        for idx in range(num_tensors):
            xf = xfs[idx] if reuse_upcasts else x_refs[idx][...].astype(jnp.float32)
            o_refs[idx][...] = (xf * inv).astype(o_refs[idx].dtype)

    return kernel


def _isru_elementwise(xs, c):
    """Plain-JAX ISRU on flat arrays (used only for the < `last` tail)."""
    s = None
    for x in xs:
        xf = x.astype(jnp.float32)
        sq = xf * xf
        s = sq if s is None else s + sq
    inv = jax.lax.rsqrt(s + float(c))
    return [(x.astype(jnp.float32) * inv).astype(x.dtype) for x in xs]


def isru(tensor_list, c):
    """tensor_list: list of identically-shaped float arrays. Returns a list."""
    L = len(tensor_list)
    assert L >= 1
    orig_shape = tensor_list[0].shape
    for t in tensor_list:
        assert t.shape == orig_shape, "all tensors must share one shape"

    total = 1
    for d in orig_shape:
        total *= d

    flats = [t.reshape(-1) for t in tensor_list]

    # Widest lane-dense width that keeps rows >= 8 (full vreg utilization);
    # fall back to 128 for small tensors.
    last = _LANE
    for cand in (2048, 1024, 512, 256, 128):
        if total // cand >= _SUBLANE:
            last = cand
            break
    rows = total // last
    prefix = rows * last
    tail = total - prefix

    tail_out = None
    if tail:
        # < `last` leftover elements: handle in plain JAX instead of padding
        # (avoids an extra full read+write of every tensor in the wrapper).
        tail_out = _isru_elementwise([f[prefix:] for f in flats], c)

    if rows == 0:
        # Tensor smaller than one 128-lane row: nothing for the kernel to do.
        return [tail_out[i].reshape(orig_shape) for i in range(L)]

    itemsize = max(jnp.dtype(t.dtype).itemsize for t in tensor_list)

    # Byte-based row-tile cap: ~2 MiB per tensor per block (>= 85% of the HBM
    # roofline regime), bounded so 2 double-buffers x 2L blocks stay <= ~24 MiB
    # (safe within v7x's 64 MiB physical VMEM).
    per_block_target = min(2 * 1024 * 1024, (24 * 1024 * 1024) // (4 * L))
    per_block_target = max(per_block_target, _SUBLANE * last * itemsize)
    tile_r = per_block_target // (last * itemsize)
    tile_r = max(_SUBLANE, (tile_r // _SUBLANE) * _SUBLANE)
    if tile_r >= rows:
        tile_r = rows  # full-extent block along rows (always legal)
    # v7x megacore: keep >= 2 grid steps when the slab is big enough to split.
    if pl.cdiv(rows, tile_r) < 2 and rows >= 2 * _SUBLANE:
        half = (rows + 1) // 2
        tile_r = ((half + _SUBLANE - 1) // _SUBLANE) * _SUBLANE

    grid = (pl.cdiv(rows, tile_r),)

    # VMEM limit derived from the actual footprint (+25% and compiler slack),
    # instead of a fixed 32 MiB constant.
    block_bytes = tile_r * last * itemsize
    footprint = 4 * L * block_bytes  # 2 double-buffers x (L inputs + L outputs)
    vmem_limit = min(max(footprint * 5 // 4 + (2 << 20), 8 << 20), 48 << 20)

    slabs = [f[:prefix].reshape(rows, last) for f in flats]
    blk = pl.BlockSpec((tile_r, last), lambda i: (i, 0))

    out = pl.pallas_call(
        _make_isru_kernel(L, c),
        out_shape=tuple(
            jax.ShapeDtypeStruct((rows, last), t.dtype) for t in tensor_list
        ),
        grid_spec=pl.GridSpec(
            grid=grid,
            in_specs=[blk] * L,
            out_specs=tuple(blk for _ in range(L)),
        ),
        compiler_params=pltpu.CompilerParams(
            dimension_semantics=("parallel",),
            vmem_limit_bytes=vmem_limit,
        ),
    )(*slabs)

    results = []
    for i, o in enumerate(out):
        body = o.reshape(-1)
        if tail:
            body = jnp.concatenate([body, tail_out[i]])
        results.append(body.reshape(orig_shape))
    return results


def isru_ref(tensor_list, c):
    """Pure-JAX reference mirroring the PyTorch forward."""
    denom = jnp.zeros_like(tensor_list[0])
    for t in tensor_list:
        denom = denom + t ** 2
    denom = jnp.sqrt(denom + c)
    return [t / denom for t in tensor_list]


if __name__ == "__main__":
    key = jax.random.PRNGKey(0)
    k1, k2 = jax.random.split(key)

    # Small shapes consistent with the module's elementwise forward:
    # a list of two NCHW tensors of shape (2, 4, 16, 16).
    shape = (2, 4, 16, 16)
    t0 = jax.random.normal(k1, shape, dtype=jnp.float32)
    t1 = jax.random.normal(k2, shape, dtype=jnp.float32)
    tensor_list = [t0, t1]

    c = 1.0  # deterministic "buffer" value from __init__(c)

    outs = isru(tensor_list, c)
    outs = [jax.block_until_ready(o) for o in outs]

    refs = isru_ref(tensor_list, c)
    for o, r in zip(outs, refs):
        assert o.shape == r.shape and o.dtype == r.dtype
        assert float(jnp.max(jnp.abs(o - r))) < 1e-5

    print("KERNEL_OK")
</pallas_src>

<mosaic_0001>
module attributes {stable_mosaic.version = 11 : i64} {
  func.func @kernel(%arg0: i32, %arg1: memref<8x256xf32, #tpu.memory_space<vmem>>, %arg2: memref<8x256xf32, #tpu.memory_space<vmem>>, %arg3: memref<8x256xf32, #tpu.memory_space<vmem>>, %arg4: memref<8x256xf32, #tpu.memory_space<vmem>>) attributes {dimension_semantics = [#tpu.dimension_semantics<parallel>], iteration_bounds = array<i64: 1>, scalar_prefetch = 0 : i64, scratch_operands = 0 : i64, tpu.core_type = #tpu.core_type<tc>, window_params = [{transform_indices = @transform_0, window_bounds = array<i64: 8, 256>}, {transform_indices = @transform_1, window_bounds = array<i64: 8, 256>}, {transform_indices = @transform_2, window_bounds = array<i64: 8, 256>}, {transform_indices = @transform_3, window_bounds = array<i64: 8, 256>}]} {
    %c0 = arith.constant 0 : index
    %c0_0 = arith.constant 0 : index
    %0 = vector.load %arg1[%c0, %c0_0] : memref<8x256xf32, #tpu.memory_space<vmem>>, vector<8x256xf32>
    %1 = arith.mulf %0, %0 : vector<8x256xf32>
    %c0_1 = arith.constant 0 : index
    %c0_2 = arith.constant 0 : index
    %2 = vector.load %arg2[%c0_1, %c0_2] : memref<8x256xf32, #tpu.memory_space<vmem>>, vector<8x256xf32>
    %3 = arith.mulf %2, %2 : vector<8x256xf32>
    %4 = arith.addf %1, %3 : vector<8x256xf32>
    %cst = arith.constant 1.000000e+00 : f32
    %5 = vector.broadcast %cst : f32 to vector<8x256xf32>
    %6 = arith.addf %4, %5 : vector<8x256xf32>
    %7 = math.rsqrt %6 : vector<8x256xf32>
    %8 = arith.mulf %0, %7 : vector<8x256xf32>
    %c0_3 = arith.constant 0 : index
    %c0_4 = arith.constant 0 : index
    %9 = vector.load %arg3[%c0_3, %c0_4] : memref<8x256xf32, #tpu.memory_space<vmem>>, vector<8x256xf32>
    tpu.vector_store %arg3[%c0_3, %c0_4], %8 {strides = array<i32>} : memref<8x256xf32, #tpu.memory_space<vmem>>, vector<8x256xf32>,
    %10 = arith.mulf %2, %7 : vector<8x256xf32>
    %c0_5 = arith.constant 0 : index
    %c0_6 = arith.constant 0 : index
    %11 = vector.load %arg4[%c0_5, %c0_6] : memref<8x256xf32, #tpu.memory_space<vmem>>, vector<8x256xf32>
    tpu.vector_store %arg4[%c0_5, %c0_6], %10 {strides = array<i32>} : memref<8x256xf32, #tpu.memory_space<vmem>>, vector<8x256xf32>,
    return
  }
  func.func @transform_0(%arg0: i32) -> (i32, i32) {
    %c0_i32 = arith.constant 0 : i32
    %c0_i32_0 = arith.constant 0 : i32
    return %arg0, %c0_i32 : i32, i32
  }
  func.func @transform_1(%arg0: i32) -> (i32, i32) {
    %c0_i32 = arith.constant 0 : i32
    %c0_i32_0 = arith.constant 0 : i32
    return %arg0, %c0_i32 : i32, i32
  }
  func.func @transform_2(%arg0: i32) -> (i32, i32) {
    %c0_i32 = arith.constant 0 : i32
    %c0_i32_0 = arith.constant 0 : i32
    return %arg0, %c0_i32 : i32, i32
  }
  func.func @transform_3(%arg0: i32) -> (i32, i32) {
    %c0_i32 = arith.constant 0 : i32
    %c0_i32_0 = arith.constant 0 : i32
    return %arg0, %c0_i32 : i32, i32
  }
}

</mosaic_0001>

<llo_original>
// kernel: tpu_custom_call.1
$region0: #{tpu_custom_call.1}
  #allocation0 [shape = 'u32[]', space=smem, size = 0x4, offset = 0x4, fixed_abs, tag = 'smem constant byte address 0x4 - core index']
  #allocation1 [shape = 'u32[144,128]{1,0:T(1,128)}', space=vmem, size = 0x12000, scoped, tag = 'internal scratch']
  %s0 = inlined_call_operand.hbm [shape: f32[8,256], index: 0, kind: input, shape index: {}]
  %s1 = inlined_call_operand.hbm [shape: f32[8,256], index: 1, kind: input, shape index: {}]
  %s2 = inlined_call_operand.hbm [shape: f32[8,256], index: 2, kind: output, shape index: {0}]
  %s3 = inlined_call_operand.hbm [shape: f32[8,256], index: 3, kind: output, shape index: {1}]
  %4 = xla_tuple %s2, %s3
  %s5 = sld [smem:[#allocation0]]
  $region34: #{tpu_custom_call.1} parent=0
    _
  %s7 = ssub.s32 1, %s5
  %s8 = scalar_select 0, %s7, %s5
  $region1: #{tpu_custom_call.1} parent=0
    #allocation2 [shape = 'u8[8192]{0}', space=vmem, size = 0x2000, scoped, tag = 'input window, operand 0, single buffered']
    #allocation3 [shape = 's32[1]{0}', space=sflag, size = 0x4, scoped, tag = 'scoped memory for tpu_custom_call.1']
    #allocation4 [shape = 's32[1]{0}', space=sflag, size = 0x4, scoped, tag = 'scoped memory for tpu_custom_call.1']
    #allocation5 [shape = 'u8[8192]{0}', space=vmem, size = 0x2000, scoped, tag = 'input window, operand 1, single buffered']
    #allocation6 [shape = 's32[1]{0}', space=sflag, size = 0x4, scoped, tag = 'scoped memory for tpu_custom_call.1']
    #allocation7 [shape = 'u8[8192]{0}', space=vmem, size = 0x2000, scoped, tag = 'output window, operand 0, single buffered']
    #allocation8 [shape = 'u8[8192]{0}', space=vmem, size = 0x2000, scoped, tag = 'output window, operand 1, single buffered']
    #allocation9 [shape = 's32[1]{0}', space=sflag, size = 0x4, scoped, tag = 'scoped memory for tpu_custom_call.1']
    %9 = vsyncpa [#allocation3], 0
    %10 = vsyncpa [#allocation6], 0
    %11 = vsyncpa [#allocation4], 0
    %12 = vsyncpa [#allocation9], 0
    // Predicated region
    $region2: #{tpu_custom_call.1} parent=1 // pred_check
      _
    $region3: #{tpu_custom_call.1} parent=1 // pred_check_branch
      %14 = sbr.rel (0) target = $region5
    $region4: #{tpu_custom_call.1} parent=1 // pred_region
      %s16 = ssub.s32 256, 256
      %17 = vsyncadd [#allocation3], %s16
      %s19 = sshll.u32 [#allocation2], 4
      %s20 = int_to_ptr.vmem [resolvable:$true] %s19
      %22 = dma.hbm_to_vmem [thread:$0]  %s0, 256, %s20, [#allocation3]
    $region5: #{tpu_custom_call.1} parent=1 // pred_fallthru
      _
    // Predicated region
    $region6: #{tpu_custom_call.1} parent=1 // pred_check
      _
    $region7: #{tpu_custom_call.1} parent=1 // pred_check_branch
      %24 = sbr.rel (0) target = $region9
    $region8: #{tpu_custom_call.1} parent=1 // pred_region
      %s26 = ssub.s32 256, 256
      %27 = vsyncadd [#allocation6], %s26
      %s29 = sshll.u32 [#allocation5], 4
      %s30 = int_to_ptr.vmem [resolvable:$true] %s29
      %32 = dma.hbm_to_vmem [thread:$0]  %s1, 256, %s30, [#allocation6]
    $region9: #{tpu_custom_call.1} parent=1 // pred_fallthru
      _
    // Predicated region
    $region10: #{tpu_custom_call.1} parent=1 // pred_check
      _
    $region11: #{tpu_custom_call.1} parent=1 // pred_check_branch
      %34 = sbr.rel (0) target = $region13
    $region12: #{tpu_custom_call.1} parent=1 // pred_region
      %35 = dma.done [#allocation3], 256
    $region13: #{tpu_custom_call.1} parent=1 // pred_fallthru
      _
    // Predicated region
    $region14: #{tpu_custom_call.1} parent=1 // pred_check
      _
    $region15: #{tpu_custom_call.1} parent=1 // pred_check_branch
      %37 = sbr.rel (0) target = $region17
    $region16: #{tpu_custom_call.1} parent=1 // pred_region
      %38 = dma.done [#allocation6], 256
    $region17: #{tpu_custom_call.1} parent=1 // pred_fallthru
      _
    %v39 = vld [vmem:[#allocation2] sm:$0xff]
    %v40 = vld [vmem:[#allocation2 + $0x8] sm:$0xff]
    %v41 = vmul.f32 %v39, %v39
    %v42 = vmul.f32 %v40, %v40
    %v43 = vld [vmem:[#allocation5] sm:$0xff]
    %v44 = vld [vmem:[#allocation5 + $0x8] sm:$0xff]
    %v45 = vmul.f32 %v43, %v43
    %v46 = vmul.f32 %v44, %v44
    %v47 = vadd.f32 %v41, %v45
    %v48 = vadd.f32 %v42, %v46
    %v49 = vadd.f32 %v47, 1.0
    %v50 = vadd.f32 %v48, 1.0
    %v51 = vrsqrt.pop %v49
    %v52 = vrsqrt.pop %v50
    %v53 = vmul.f32 %v39, %v51
    %v54 = vmul.f32 %v40, %v52
    %55 = vst [vmem:[#allocation7] sm:$0xff] %v53
    %56 = vst [vmem:[#allocation7 + $0x8] sm:$0xff] %v54
    %v57 = vmul.f32 %v43, %v51
    %v58 = vmul.f32 %v44, %v52
    %59 = vst [vmem:[#allocation8] sm:$0xff] %v57
    %60 = vst [vmem:[#allocation8 + $0x8] sm:$0xff] %v58
    // Predicated region
    $region18: #{tpu_custom_call.1} parent=1 // pred_check
      _
    $region19: #{tpu_custom_call.1} parent=1 // pred_check_branch
      %62 = sbr.rel (0) target = $region21
    $region20: #{tpu_custom_call.1} parent=1 // pred_region
      %s64 = ssub.s32 256, 256
      %65 = vsyncadd [#allocation4], %s64
      %s67 = sshll.u32 [#allocation7], 4
      %s68 = int_to_ptr.vmem [resolvable:$true] %s67
      %70 = dma.vmem_to_hbm [thread:$0]  %s68, 256, %s2, [#allocation4]
    $region21: #{tpu_custom_call.1} parent=1 // pred_fallthru
      _
    // Predicated region
    $region22: #{tpu_custom_call.1} parent=1 // pred_check
      _
    $region23: #{tpu_custom_call.1} parent=1 // pred_check_branch
      %72 = sbr.rel (0) target = $region25
    $region24: #{tpu_custom_call.1} parent=1 // pred_region
      %s74 = ssub.s32 256, 256
      %75 = vsyncadd [#allocation9], %s74
      %s77 = sshll.u32 [#allocation8], 4
      %s78 = int_to_ptr.vmem [resolvable:$true] %s77
      %80 = dma.vmem_to_hbm [thread:$0]  %s78, 256, %s3, [#allocation9]
    $region25: #{tpu_custom_call.1} parent=1 // pred_fallthru
      _
    // Predicated region
    $region26: #{tpu_custom_call.1} parent=1 // pred_check
      _
    $region27: #{tpu_custom_call.1} parent=1 // pred_check_branch
      %82 = sbr.rel (0) target = $region29
    $region28: #{tpu_custom_call.1} parent=1 // pred_region
      %83 = dma.done [#allocation4], 256
    $region29: #{tpu_custom_call.1} parent=1 // pred_fallthru
      _
    // Predicated region
    $region30: #{tpu_custom_call.1} parent=1 // pred_check
      _
    $region31: #{tpu_custom_call.1} parent=1 // pred_check_branch
      %85 = sbr.rel (0) target = $region33
    $region32: #{tpu_custom_call.1} parent=1 // pred_region
      %86 = dma.done [#allocation9], 256
    $region33: #{tpu_custom_call.1} parent=1 // pred_fallthru
      _
    %87 = vsyncpa [#allocation3], 1
    %88 = vsyncpa [#allocation6], 1
    %89 = vsyncpa [#allocation4], 1
    %90 = vsyncpa [#allocation9], 1

</llo_original>
